<compile_context>
chip_gen: v5e
topology: v5e:2x2
jax: 0.10.0
libtpu: 0.0.40
codegen_flags: <defaults>
</compile_context>

<pallas_src>
import functools

import jax
import jax.numpy as jnp
from jax.experimental import pallas as pl
from jax.experimental.pallas import tpu as pltpu

_LANES = 128
_STRIP_ROWS = 512                        # per-strip: 512 x 128 f32 = 256 KiB
_VMEM_LIMIT_BYTES = 32 * 1024 * 1024     # <= physical VMEM on v5e/v6e/v7x


def _cdiv(a, b):
    return -(-a // b)


@functools.lru_cache(maxsize=None)
def _chip_kind():
    try:
        return jax.devices()[0].device_kind.lower()
    except Exception:          # no TPU visible at trace time -> conservative
        return ""


def _num_tensorcores():
    # v5e/v6e are single-TensorCore: a >1 "core" axis would only add grid
    # steps and duplicate HBM fetches.  v7x has two TCs behind one device.
    # TODO(synk): verify on v7x (xprof) that plain "parallel" shards across
    # both TCs; if not, switch that axis to pltpu.CORE_PARALLEL / pl.core_map.
    return 2 if "v7" in _chip_kind() else 1


def _max_tile_rows():
    # 4096 x 128 f32 = 2 MiB per input per pipeline buffer (worst case:
    # 3 inputs x 2 buffers = 12 MiB).  Cap at 2048 on v5e (16 MiB default
    # scoped VMEM) even though we also raise vmem_limit_bytes explicitly.
    kind = _chip_kind()
    if ("v5 lite" in kind) or ("v5lite" in kind) or ("v5e" in kind):
        return 2048
    return 4096


# ---------------------------------------------------------------------------
# Generic tiled sum-reduction driver (shared by all three losses)
# ---------------------------------------------------------------------------
def _sum_reduce(elem_fn, arrays, num_accs, *, flops_per_elem=8, transc_per_elem=0):
    """Sum-reduce `num_accs` elementwise quantities over flattened `arrays`.

    `elem_fn(*f32_strips)` returns `num_accs` f32 arrays of the strip shape.
    Inputs are zero-padded to a whole number of (tile_rows, 128) blocks;
    `elem_fn` MUST map all-zero inputs to zero outputs (true for all three
    losses here), so no in-kernel masking is needed and no out-of-bounds
    block content is ever read.  Returns `num_accs` f32 scalar sums.
    """
    n = int(arrays[0].size)
    num_in = len(arrays)

    # ---- layout: rows of 128 lanes; whole strips; whole blocks -------------
    rows = _cdiv(n, 8 * _LANES) * 8                  # multiple of 8 sublanes
    if rows <= _STRIP_ROWS:                          # small input: 1 block, 1 strip
        tile_rows = rows
        strip = rows
    else:
        rows = _cdiv(rows, _STRIP_ROWS) * _STRIP_ROWS
        tile_rows = min(_max_tile_rows(), rows)      # multiple of _STRIP_ROWS
        rows = _cdiv(rows, tile_rows) * tile_rows    # whole blocks -> no ragged tail
        strip = _STRIP_ROWS
    nstrips = tile_rows // strip
    nblocks = rows // tile_rows
    total = rows * _LANES

    flats = [jnp.reshape(a, (-1,)) for a in arrays]
    if total != n:
        flats = [jnp.pad(f, (0, total - n)) for f in flats]   # zeros are neutral
    arrs2d = [f.reshape(rows, _LANES) for f in flats]

    num_cores = max(1, min(_num_tensorcores(), nblocks))
    bpc = _cdiv(nblocks, num_cores)                  # blocks per core slice
    dup = (num_cores * bpc != nblocks)               # trailing slice has clamped dups

    def kernel(*refs):
        in_refs = refs[:num_in]
        out_refs = refs[num_in:]
        c = pl.program_id(0)                         # core slice ('parallel')
        i = pl.program_id(1)                         # reduction step ('arbitrary')

        @pl.when(i == 0)
        def _init():
            for o in out_refs:
                o[...] = jnp.zeros_like(o)

        def compute():
            # Strip-mine the block: per strip the up-cast inputs and all
            # intermediates are only a few vregs wide; each accumulator is a
            # single (8, 128) f32 slab folded with pure VPU adds (no per-step
            # XLU scalar reduce, no full-tile f32 temporaries via the vector
            # store slot).
            accs = [jnp.zeros((8, _LANES), jnp.float32) for _ in range(num_accs)]
            for s in range(nstrips):                 # static -> straight-line code
                r0 = s * strip
                vals = [r[pl.ds(r0, strip), :].astype(jnp.float32) for r in in_refs]
                parts = elem_fn(*vals)
                accs = [a + p.reshape(strip // 8, 8, _LANES).sum(axis=0)
                        for a, p in zip(accs, parts)]
            for o, a in zip(out_refs, accs):
                o[...] = o[...] + a.reshape(1, 8, _LANES)

        if dup:
            # Clamped duplicate blocks on the trailing core slice skip all
            # elementwise work (their prefetch DMA is harmless).
            pl.when(c * bpc + i < nblocks)(compute)
        else:
            compute()

    def in_map(c, i):
        b = c * bpc + i
        if dup:
            b = jnp.minimum(b, nblocks - 1)          # keep the prefetch in bounds
        return (b, 0)

    in_specs = [pl.BlockSpec((tile_rows, _LANES), in_map) for _ in range(num_in)]
    out_specs = [pl.BlockSpec((1, 8, _LANES), lambda c, i: (c, 0, 0))
                 for _ in range(num_accs)]
    out_shape = [jax.ShapeDtypeStruct((num_cores, 8, _LANES), jnp.float32)
                 for _ in range(num_accs)]

    in_bytes = sum(int(a.size) * a.dtype.itemsize for a in arrays)
    cost = pl.CostEstimate(
        flops=int(flops_per_elem) * n,
        transcendentals=int(transc_per_elem) * n,
        bytes_accessed=in_bytes + num_accs * num_cores * 8 * _LANES * 4)

    outs = pl.pallas_call(
        kernel,
        grid=(num_cores, bpc),
        in_specs=in_specs,
        out_specs=out_specs,
        out_shape=out_shape,
        compiler_params=pltpu.CompilerParams(
            dimension_semantics=("parallel", "arbitrary"),
            vmem_limit_bytes=_VMEM_LIMIT_BYTES),
        cost_estimate=cost,
    )(*arrs2d)

    if not isinstance(outs, (tuple, list)):
        outs = (outs,)
    # Tiny final cross-lane reduce of the per-core (8, 128) partial slabs.
    return tuple(jnp.sum(o) for o in outs)


# ---------------------------------------------------------------------------
# Per-loss elementwise bodies (run inside the kernel; zeros map to zeros)
# ---------------------------------------------------------------------------
def _focal_elems(pred, gt):
    """CornerNet _neg_loss elementwise terms — a single log per element."""
    pos = gt == 1.0
    neg = gt < 1.0
    one_m_p = 1.0 - pred
    one_m_g = 1.0 - gt
    neg_w = (one_m_g * one_m_g) * (one_m_g * one_m_g)        # (1 - gt)^4
    log_arg = jnp.where(pos, pred, one_m_p)                  # one EUP log, not two
    weight = jnp.where(pos, one_m_p * one_m_p,
                       jnp.where(neg, pred * pred * neg_w, 0.0))
    loss = jnp.log(log_arg) * weight
    num_pos = jnp.where(pos, 1.0, 0.0)
    return loss, num_pos


def _smooth_l1_elems(pred, gt, *, beta, inv_beta):
    diff = jnp.abs(pred - gt)
    loss = jnp.where(diff < beta, 0.5 * inv_beta * diff * diff, diff - 0.5 * beta)
    return (loss,)


def _reg_l1_kp_elems(pred, gt, mask):
    loss = jnp.abs((pred - gt) * mask)
    cnt = (mask != 0.0).astype(jnp.float32)
    return loss, cnt


# ---------------------------------------------------------------------------
# Loss wrappers (tiny scalar epilogues; Pallas does all heavy lifting)
# ---------------------------------------------------------------------------
def focal_loss(pred, gt):
    """CornerNet-style focal loss (_neg_loss with channel_weights=None)."""
    # TODO(synk): per-channel `channel_weights` (weights_list) variant is not
    # implemented; LaneLossAggress.forward never passes it.
    loss_sum, num_pos = _sum_reduce(_focal_elems, [pred, gt], num_accs=2,
                                    flops_per_elem=14, transc_per_elem=1)
    return jnp.where(num_pos > 2.0, -loss_sum / num_pos, jnp.float32(0.0))


def smooth_l1_loss(pred, gt, *, beta=1.0 / 9.0, loss_weight=1.0):
    """mmdet SmoothL1Loss with 'mean' reduction."""
    elem = functools.partial(_smooth_l1_elems, beta=beta, inv_beta=1.0 / beta)
    (loss_sum,) = _sum_reduce(elem, [pred, gt], num_accs=1, flops_per_elem=6)
    return loss_weight * loss_sum / pred.size


def reg_l1_kp_loss(pred, gt, mask):
    """RegL1KpLoss: sum |(pred - gt) * mask| / (count(mask != 0) + 1e-4)."""
    loss_sum, cnt = _sum_reduce(_reg_l1_kp_elems, [pred, gt, mask], num_accs=2,
                                flops_per_elem=5)
    return loss_sum / (cnt + 1e-4)


class LaneLossAggress:
    """JAX/Pallas port of GANet LaneLossAggress (forward only).

    Inputs may be bf16: they are up-cast to f32 in-register inside the kernel
    (never in the wrapper), halving HBM traffic for bf16 heatmaps.
    """
    # TODO(synk): the three reductions still run as three pallas_call launches;
    # for tiny per-head tensors a single fused launch would cut fixed overhead.

    def __init__(self, smooth_l1_beta=1.0 / 9.0, smooth_l1_weight=1.0):
        self._smooth_l1_beta = smooth_l1_beta
        self._smooth_l1_weight = smooth_l1_weight

    def _dispatch(self, loss_type):
        if loss_type == 'focalloss':
            return focal_loss
        if loss_type == 'smoothl1loss':
            return functools.partial(smooth_l1_loss,
                                     beta=self._smooth_l1_beta,
                                     loss_weight=self._smooth_l1_weight)
        if loss_type == 'regl1kploss':
            return reg_l1_kp_loss
        raise ValueError(f"unknown loss type: {loss_type}")

    def __call__(self, outputs, weight=1.0):
        loss_result = {}
        for i, item in enumerate(outputs):
            fn = self._dispatch(item['type'])
            if 'mask' in item:
                val = fn(item['pred'], item['gt'], item['mask'])
            else:
                val = fn(item['pred'], item['gt'])
            loss_result[f"{i}_{item['type']}"] = val * item.get('weight', 1.0)
        return loss_result


# ---------------------------------------------------------------------------
# Pure-JAX references (mirror the PyTorch formulas) for self-check
# ---------------------------------------------------------------------------
def _focal_ref(pred, gt):
    pred = pred.astype(jnp.float32)
    gt = gt.astype(jnp.float32)
    pos = (gt == 1.0).astype(jnp.float32)
    neg = (gt < 1.0).astype(jnp.float32)
    neg_w = jnp.power(1.0 - gt, 4)
    pos_l = jnp.log(pred) * jnp.square(1.0 - pred) * pos
    neg_l = jnp.log(1.0 - pred) * jnp.square(pred) * neg_w * neg
    num_pos = pos.sum()
    return jnp.where(num_pos > 2,
                     -(pos_l.sum() + neg_l.sum()) / num_pos,
                     jnp.float32(0.0))


def _smooth_l1_ref(pred, gt, beta=1.0 / 9.0, loss_weight=1.0):
    diff = jnp.abs(pred - gt)
    loss = jnp.where(diff < beta, 0.5 * diff * diff / beta, diff - 0.5 * beta)
    return loss_weight * jnp.mean(loss)


def _reg_l1_kp_ref(pred, gt, mask):
    loss = jnp.sum(jnp.abs(pred * mask - gt * mask))
    cnt = jnp.sum((mask != 0).astype(jnp.float32))
    return loss / (cnt + 1e-4)


if __name__ == "__main__":
    key = jax.random.PRNGKey(0)
    k = jax.random.split(key, 8)

    # Focal-loss heatmaps (B, C, H, W): pred in (0,1), gt in [0,1) with exact 1s.
    hm_shape = (2, 4, 16, 16)
    pred_hm = jax.random.uniform(k[0], hm_shape, jnp.float32, 0.01, 0.99)
    gt_hm = jax.random.uniform(k[1], hm_shape, jnp.float32, 0.0, 0.999)
    pos_mask = jax.random.bernoulli(k[2], 0.02, hm_shape)
    gt_hm = jnp.where(pos_mask, 1.0, gt_hm)        # > 2 positives exercised

    # Smooth-L1 regression maps (B, C, H, W).
    reg_shape = (2, 4, 16, 16)
    pred_reg = jax.random.normal(k[3], reg_shape, jnp.float32)
    gt_reg = pred_reg + 0.3 * jax.random.normal(k[4], reg_shape, jnp.float32)

    # Masked keypoint L1 (B, C, H, W) + float mask with zeros.
    kp_shape = (2, 2, 16, 16)
    pred_kp = jax.random.normal(k[5], kp_shape, jnp.float32)
    gt_kp = jax.random.normal(k[6], kp_shape, jnp.float32)
    mask_kp = jax.random.bernoulli(k[7], 0.3, kp_shape).astype(jnp.float32)

    outputs = [
        dict(type='focalloss', pred=pred_hm, gt=gt_hm, weight=1.0),
        dict(type='smoothl1loss', pred=pred_reg, gt=gt_reg, weight=0.5),
        dict(type='regl1kploss', pred=pred_kp, gt=gt_kp, mask=mask_kp, weight=2.0),
    ]

    loss_fn = LaneLossAggress()
    result = loss_fn(outputs)
    result = {name: jax.block_until_ready(v) for name, v in result.items()}

    ref = {
        '0_focalloss': _focal_ref(pred_hm, gt_hm) * 1.0,
        '1_smoothl1loss': _smooth_l1_ref(pred_reg, gt_reg) * 0.5,
        '2_regl1kploss': _reg_l1_kp_ref(pred_kp, gt_kp, mask_kp) * 2.0,
    }
    for name in ref:
        assert jnp.allclose(result[name], ref[name], rtol=1e-4, atol=1e-5), (
            name, result[name], ref[name])

    print("KERNEL_OK")
</pallas_src>

<mosaic_0001>
module attributes {stable_mosaic.version = 11 : i64} {
  func.func @kernel(%arg0: i32, %arg1: i32, %arg2: memref<16x128xf32, #tpu.memory_space<vmem>>, %arg3: memref<16x128xf32, #tpu.memory_space<vmem>>, %arg4: memref<1x8x128xf32, #tpu.memory_space<vmem>>, %arg5: memref<1x8x128xf32, #tpu.memory_space<vmem>>) attributes {dimension_semantics = [#tpu.dimension_semantics<parallel>, #tpu.dimension_semantics<arbitrary>], iteration_bounds = array<i64: 1, 1>, scalar_prefetch = 0 : i64, scratch_operands = 0 : i64, tpu.core_type = #tpu.core_type<tc>, window_params = [{transform_indices = @transform_0, window_bounds = array<i64: 16, 128>}, {transform_indices = @transform_1, window_bounds = array<i64: 16, 128>}, {transform_indices = @transform_2, window_bounds = array<i64: 1, 8, 128>}, {transform_indices = @transform_3, window_bounds = array<i64: 1, 8, 128>}]} {
    %c0_i32 = arith.constant 0 : i32
    %0 = arith.cmpi eq, %arg1, %c0_i32 : i32
    %1 = arith.extui %0 : i1 to i32
    %c0_i32_0 = arith.constant 0 : i32
    %2 = arith.cmpi ne, %1, %c0_i32_0 : i32
    scf.if %2 {
      %cst_26 = arith.constant 0.000000e+00 : f32
      %44 = vector.broadcast %cst_26 : f32 to vector<1x8x128xf32>
      %c0_27 = arith.constant 0 : index
      %c0_28 = arith.constant 0 : index
      %c0_29 = arith.constant 0 : index
      %45 = vector.load %arg4[%c0_27, %c0_28, %c0_29] : memref<1x8x128xf32, #tpu.memory_space<vmem>>, vector<1x8x128xf32>
      tpu.vector_store %arg4[%c0_27, %c0_28, %c0_29], %44 {strides = array<i32>} : memref<1x8x128xf32, #tpu.memory_space<vmem>>, vector<1x8x128xf32>,
      %cst_30 = arith.constant 0.000000e+00 : f32
      %46 = vector.broadcast %cst_30 : f32 to vector<1x8x128xf32>
      %c0_31 = arith.constant 0 : index
      %c0_32 = arith.constant 0 : index
      %c0_33 = arith.constant 0 : index
      %47 = vector.load %arg5[%c0_31, %c0_32, %c0_33] : memref<1x8x128xf32, #tpu.memory_space<vmem>>, vector<1x8x128xf32>
      tpu.vector_store %arg5[%c0_31, %c0_32, %c0_33], %46 {strides = array<i32>} : memref<1x8x128xf32, #tpu.memory_space<vmem>>, vector<1x8x128xf32>,
    } else {
    }
    %cst = arith.constant 0.000000e+00 : f32
    %3 = vector.broadcast %cst : f32 to vector<8x128xf32>
    %cst_1 = arith.constant 0.000000e+00 : f32
    %4 = vector.broadcast %cst_1 : f32 to vector<8x128xf32>
    %c0 = arith.constant 0 : index
    %c0_2 = arith.constant 0 : index
    %5 = vector.load %arg2[%c0, %c0_2] : memref<16x128xf32, #tpu.memory_space<vmem>>, vector<16x128xf32>
    %c0_3 = arith.constant 0 : index
    %c0_4 = arith.constant 0 : index
    %6 = vector.load %arg3[%c0_3, %c0_4] : memref<16x128xf32, #tpu.memory_space<vmem>>, vector<16x128xf32>
    %cst_5 = arith.constant 1.000000e+00 : f32
    %7 = vector.broadcast %cst_5 : f32 to vector<16x128xf32>
    %8 = arith.cmpf oeq, %6, %7 : vector<16x128xf32>
    %cst_6 = arith.constant 1.000000e+00 : f32
    %9 = vector.broadcast %cst_6 : f32 to vector<16x128xf32>
    %10 = arith.cmpf olt, %6, %9 : vector<16x128xf32>
    %cst_7 = arith.constant 1.000000e+00 : f32
    %11 = vector.broadcast %cst_7 : f32 to vector<16x128xf32>
    %12 = arith.subf %11, %5 : vector<16x128xf32>
    %cst_8 = arith.constant 1.000000e+00 : f32
    %13 = vector.broadcast %cst_8 : f32 to vector<16x128xf32>
    %14 = arith.subf %13, %6 : vector<16x128xf32>
    %15 = arith.mulf %14, %14 : vector<16x128xf32>
    %16 = arith.mulf %14, %14 : vector<16x128xf32>
    %17 = arith.mulf %15, %16 : vector<16x128xf32>
    %18 = arith.select %8, %5, %12 : vector<16x128xi1>, vector<16x128xf32>
    %19 = arith.mulf %12, %12 : vector<16x128xf32>
    %20 = arith.mulf %5, %5 : vector<16x128xf32>
    %21 = arith.mulf %20, %17 : vector<16x128xf32>
    %cst_9 = arith.constant 0.000000e+00 : f32
    %22 = vector.broadcast %cst_9 : f32 to vector<16x128xf32>
    %23 = arith.select %10, %21, %22 : vector<16x128xi1>, vector<16x128xf32>
    %24 = arith.select %8, %19, %23 : vector<16x128xi1>, vector<16x128xf32>
    %25 = math.log %18 : vector<16x128xf32>
    %26 = arith.mulf %25, %24 : vector<16x128xf32>
    %cst_10 = arith.constant 1.000000e+00 : f32
    %cst_11 = arith.constant 0.000000e+00 : f32
    %27 = vector.broadcast %cst_10 : f32 to vector<16x128xf32>
    %28 = vector.broadcast %cst_11 : f32 to vector<16x128xf32>
    %29 = arith.select %8, %27, %28 : vector<16x128xi1>, vector<16x128xf32>
    %30 = vector.shape_cast %26 : vector<16x128xf32> to vector<2x8x128xf32>
    %cst_12 = arith.constant dense<0.000000e+00> : vector<8x128xf32>
    %31 = vector.multi_reduction <add>, %30, %cst_12 [0] : vector<2x8x128xf32> to vector<8x128xf32>
    %32 = arith.addf %3, %31 : vector<8x128xf32>
    %33 = vector.shape_cast %29 : vector<16x128xf32> to vector<2x8x128xf32>
    %cst_13 = arith.constant dense<0.000000e+00> : vector<8x128xf32>
    %34 = vector.multi_reduction <add>, %33, %cst_13 [0] : vector<2x8x128xf32> to vector<8x128xf32>
    %35 = arith.addf %4, %34 : vector<8x128xf32>
    %c0_14 = arith.constant 0 : index
    %c0_15 = arith.constant 0 : index
    %c0_16 = arith.constant 0 : index
    %36 = vector.load %arg4[%c0_14, %c0_15, %c0_16] : memref<1x8x128xf32, #tpu.memory_space<vmem>>, vector<1x8x128xf32>
    %37 = vector.shape_cast %32 : vector<8x128xf32> to vector<1x8x128xf32>
    %38 = arith.addf %36, %37 : vector<1x8x128xf32>
    %c0_17 = arith.constant 0 : index
    %c0_18 = arith.constant 0 : index
    %c0_19 = arith.constant 0 : index
    %39 = vector.load %arg4[%c0_17, %c0_18, %c0_19] : memref<1x8x128xf32, #tpu.memory_space<vmem>>, vector<1x8x128xf32>
    tpu.vector_store %arg4[%c0_17, %c0_18, %c0_19], %38 {strides = array<i32>} : memref<1x8x128xf32, #tpu.memory_space<vmem>>, vector<1x8x128xf32>,
    %c0_20 = arith.constant 0 : index
    %c0_21 = arith.constant 0 : index
    %c0_22 = arith.constant 0 : index
    %40 = vector.load %arg5[%c0_20, %c0_21, %c0_22] : memref<1x8x128xf32, #tpu.memory_space<vmem>>, vector<1x8x128xf32>
    %41 = vector.shape_cast %35 : vector<8x128xf32> to vector<1x8x128xf32>
    %42 = arith.addf %40, %41 : vector<1x8x128xf32>
    %c0_23 = arith.constant 0 : index
    %c0_24 = arith.constant 0 : index
    %c0_25 = arith.constant 0 : index
    %43 = vector.load %arg5[%c0_23, %c0_24, %c0_25] : memref<1x8x128xf32, #tpu.memory_space<vmem>>, vector<1x8x128xf32>
    tpu.vector_store %arg5[%c0_23, %c0_24, %c0_25], %42 {strides = array<i32>} : memref<1x8x128xf32, #tpu.memory_space<vmem>>, vector<1x8x128xf32>,
    return
  }
  func.func @transform_0(%arg0: i32, %arg1: i32) -> (i32, i32) {
    %c1_i32 = arith.constant 1 : i32
    %0 = arith.muli %arg0, %c1_i32 : i32
    %1 = arith.addi %0, %arg1 : i32
    %c0_i32 = arith.constant 0 : i32
    %c0_i32_0 = arith.constant 0 : i32
    return %1, %c0_i32 : i32, i32
  }
  func.func @transform_1(%arg0: i32, %arg1: i32) -> (i32, i32) {
    %c1_i32 = arith.constant 1 : i32
    %0 = arith.muli %arg0, %c1_i32 : i32
    %1 = arith.addi %0, %arg1 : i32
    %c0_i32 = arith.constant 0 : i32
    %c0_i32_0 = arith.constant 0 : i32
    return %1, %c0_i32 : i32, i32
  }
  func.func @transform_2(%arg0: i32, %arg1: i32) -> (i32, i32, i32) {
    %c0_i32 = arith.constant 0 : i32
    %c0_i32_0 = arith.constant 0 : i32
    %c0_i32_1 = arith.constant 0 : i32
    return %arg0, %c0_i32, %c0_i32_0 : i32, i32, i32
  }
  func.func @transform_3(%arg0: i32, %arg1: i32) -> (i32, i32, i32) {
    %c0_i32 = arith.constant 0 : i32
    %c0_i32_0 = arith.constant 0 : i32
    %c0_i32_1 = arith.constant 0 : i32
    return %arg0, %c0_i32, %c0_i32_0 : i32, i32, i32
  }
}

</mosaic_0001>

<llo_original>
// kernel: tpu_custom_call.1
$region0: #{tpu_custom_call.1}
  #allocation0 [shape = 'u32[]', space=smem, size = 0x4, offset = 0x4, fixed_abs, tag = 'smem constant byte address 0x4 - core index']
  #allocation1 [shape = 'u32[72,128]{1,0:T(1,128)}', space=vmem, size = 0x9000, scoped, tag = 'internal scratch']
  %s0 = inlined_call_operand.hbm [shape: f32[16,128], index: 0, kind: input, shape index: {}]
  %s1 = inlined_call_operand.hbm [shape: f32[16,128], index: 1, kind: input, shape index: {}]
  %s2 = inlined_call_operand.hbm [shape: f32[1,8,128], index: 2, kind: output, shape index: {0}]
  %s3 = inlined_call_operand.hbm [shape: f32[1,8,128], index: 3, kind: output, shape index: {1}]
  %4 = xla_tuple %s2, %s3
  %s5 = sld [smem:[#allocation0]]
  $region38: #{tpu_custom_call.1} parent=0
    _
  %s7 = ssub.s32 1, %s5
  %s8 = scalar_select 0, %s7, %s5
  $region1: #{tpu_custom_call.1} parent=0
    #allocation2 [shape = 'u8[8192]{0}', space=vmem, size = 0x2000, scoped, tag = 'input window, operand 0, single buffered']
    #allocation3 [shape = 's32[1]{0}', space=sflag, size = 0x4, scoped, tag = 'scoped memory for tpu_custom_call.1']
    #allocation4 [shape = 's32[1]{0}', space=sflag, size = 0x4, scoped, tag = 'scoped memory for tpu_custom_call.1']
    #allocation5 [shape = 'u8[8192]{0}', space=vmem, size = 0x2000, scoped, tag = 'input window, operand 1, single buffered']
    #allocation6 [shape = 's32[1]{0}', space=sflag, size = 0x4, scoped, tag = 'scoped memory for tpu_custom_call.1']
    #allocation7 [shape = 'u8[4096]{0}', space=vmem, size = 0x1000, scoped, tag = 'output window, operand 0, single buffered']
    #allocation8 [shape = 'u8[4096]{0}', space=vmem, size = 0x1000, scoped, tag = 'output window, operand 1, single buffered']
    #allocation9 [shape = 's32[1]{0}', space=sflag, size = 0x4, scoped, tag = 'scoped memory for tpu_custom_call.1']
    %9 = vsyncpa [#allocation3], 0
    %10 = vsyncpa [#allocation6], 0
    %11 = vsyncpa [#allocation4], 0
    %12 = vsyncpa [#allocation9], 0
    // Predicated region
    $region2: #{tpu_custom_call.1} parent=1 // pred_check
      _
    $region3: #{tpu_custom_call.1} parent=1 // pred_check_branch
      %14 = sbr.rel (0) target = $region5
    $region4: #{tpu_custom_call.1} parent=1 // pred_region
      %s15 = sadd.s32 0, 0
      %s16 = smul.u32 2, %s15
      %18 = vsyncadd [#allocation3], 0
      %s19 = smul.addr %s16, 8
      %s20 = scalar_lea.hbm %s0, %s19
      %s21 = sshll.u32 %s20, 4
      %s22 = int_to_ptr.hbm [resolvable:$true] %s21
      %s23 = sshll.u32 [#allocation2], 4
      %s24 = int_to_ptr.vmem [resolvable:$true] %s23
      %29 = dma.hbm_to_vmem [thread:$0]  %s22, 256, %s24, [#allocation3], 128, 128, 8
    $region5: #{tpu_custom_call.1} parent=1 // pred_fallthru
      _
    // Predicated region
    $region6: #{tpu_custom_call.1} parent=1 // pred_check
      _
    $region7: #{tpu_custom_call.1} parent=1 // pred_check_branch
      %31 = sbr.rel (0) target = $region9
    $region8: #{tpu_custom_call.1} parent=1 // pred_region
      %s32 = sadd.s32 0, 0
      %s33 = smul.u32 2, %s32
      %35 = vsyncadd [#allocation6], 0
      %s36 = smul.addr %s33, 8
      %s37 = scalar_lea.hbm %s1, %s36
      %s38 = sshll.u32 %s37, 4
      %s39 = int_to_ptr.hbm [resolvable:$true] %s38
      %s40 = sshll.u32 [#allocation5], 4
      %s41 = int_to_ptr.vmem [resolvable:$true] %s40
      %46 = dma.hbm_to_vmem [thread:$0]  %s39, 256, %s41, [#allocation6], 128, 128, 8
    $region9: #{tpu_custom_call.1} parent=1 // pred_fallthru
      _
    // Predicated region
    $region10: #{tpu_custom_call.1} parent=1 // pred_check
      _
    $region11: #{tpu_custom_call.1} parent=1 // pred_check_branch
      %48 = sbr.rel (0) target = $region13
    $region12: #{tpu_custom_call.1} parent=1 // pred_region
      %50 = dma.done [#allocation3], 256
    $region13: #{tpu_custom_call.1} parent=1 // pred_fallthru
      _
    // Predicated region
    $region14: #{tpu_custom_call.1} parent=1 // pred_check
      _
    $region15: #{tpu_custom_call.1} parent=1 // pred_check_branch
      %52 = sbr.rel (0) target = $region17
    $region16: #{tpu_custom_call.1} parent=1 // pred_region
      %54 = dma.done [#allocation6], 256
    $region17: #{tpu_custom_call.1} parent=1 // pred_fallthru
      _
    %s55 = sadd.s32 0, 0
    %s56 = smul.u32 2, %s55
    %s57 = sadd.s32 0, 0
    %s58 = smul.u32 2, %s57
    %p59 = scmp.eq.s32.totalorder 0, 0
    // Predicated region
    $region18: #{tpu_custom_call.1} parent=1 // pred_check
      %p60 = pneg %p59
    $region19: #{tpu_custom_call.1} parent=1 // pred_check_branch
      %62 = sbr.rel (%p60) target = $region21
    $region20: #{tpu_custom_call.1} parent=1 // pred_region
      %63 = vst [vmem:[#allocation7] sm:$0xff] 0.0
      %64 = vst [vmem:[#allocation8] sm:$0xff] 0.0
    $region21: #{tpu_custom_call.1} parent=1 // pred_fallthru
      _
    %v65 = vld [vmem:[#allocation2] sm:$0xff]
    %v66 = vld [vmem:[#allocation2 + $0x8] sm:$0xff]
    %v67 = vld [vmem:[#allocation5] sm:$0xff]
    %v68 = vld [vmem:[#allocation5 + $0x8] sm:$0xff]
    %vm69 = vcmp.eq.f32.partialorder %v67, 1.0
    %vm70 = vcmp.eq.f32.partialorder %v68, 1.0
    %vm71 = vcmp.lt.f32.partialorder %v67, 1.0
    %vm72 = vcmp.lt.f32.partialorder %v68, 1.0
    %v73 = vsub.f32 1.0, %v65
    %v74 = vsub.f32 1.0, %v66
    %v75 = vsub.f32 1.0, %v67
    %v76 = vsub.f32 1.0, %v68
    %v77 = vmul.f32 %v75, %v75
    %v78 = vmul.f32 %v76, %v76
    %v79 = vmul.f32 %v77, %v77
    %v80 = vmul.f32 %v78, %v78
    %v81 = vsel %vm69, %v65, %v73
    %v82 = vsel %vm70, %v66, %v74
    %v83 = vmul.f32 %v73, %v73
    %v84 = vmul.f32 %v74, %v74
    %v85 = vmul.f32 %v65, %v65
    %v86 = vmul.f32 %v66, %v66
    %v87 = vmul.f32 %v85, %v79
    %v88 = vmul.f32 %v86, %v80
    %v89 = vsel %vm71, %v87, 0.0
    %v90 = vsel %vm72, %v88, 0.0
    %v91 = vsel %vm69, %v83, %v89
    %v92 = vsel %vm70, %v84, %v90
    %v93 = vlog2.pop %v81
    %v94 = vmul.f32 %v93, 0.6931472
    %v95 = vlog2.pop %v82
    %v96 = vmul.f32 %v95, 0.6931472
    %v97 = vmul.f32 %v94, %v91
    %v98 = vmul.f32 %v96, %v92
    %v99 = vsel %vm69, 1.0, 0.0
    %v100 = vsel %vm70, 1.0, 0.0
    %v101 = vadd.f32 %v97, %v98
    %v102 = vadd.f32 %v101, 0.0
    %v103 = vadd.f32 %v99, %v100
    %v104 = vadd.f32 %v103, 0.0
    %v105 = vld [vmem:[#allocation7] sm:$0xff]
    %v106 = vadd.f32 %v105, %v102
    %107 = vst [vmem:[#allocation7] sm:$0xff] %v106
    %v108 = vld [vmem:[#allocation8] sm:$0xff]
    %v109 = vadd.f32 %v108, %v104
    %110 = vst [vmem:[#allocation8] sm:$0xff] %v109
    // Predicated region
    $region22: #{tpu_custom_call.1} parent=1 // pred_check
      _
    $region23: #{tpu_custom_call.1} parent=1 // pred_check_branch
      %112 = sbr.rel (0) target = $region25
    $region24: #{tpu_custom_call.1} parent=1 // pred_region
      %114 = vsyncadd [#allocation4], 0
      %s116 = sshll.u32 [#allocation7], 4
      %s117 = int_to_ptr.vmem [resolvable:$true] %s116
      %s118 = sshll.u32 %s2, 4
      %s119 = int_to_ptr.hbm [resolvable:$true] %s118
      %121 = dma.vmem_to_hbm [thread:$0]  %s117, 128, %s119, [#allocation4]
    $region25: #{tpu_custom_call.1} parent=1 // pred_fallthru
      _
    // Predicated region
    $region26: #{tpu_custom_call.1} parent=1 // pred_check
      _
    $region27: #{tpu_custom_call.1} parent=1 // pred_check_branch
      %123 = sbr.rel (0) target = $region29
    $region28: #{tpu_custom_call.1} parent=1 // pred_region
      %125 = vsyncadd [#allocation9], 0
      %s127 = sshll.u32 [#allocation8], 4
      %s128 = int_to_ptr.vmem [resolvable:$true] %s127
      %s129 = sshll.u32 %s3, 4
      %s130 = int_to_ptr.hbm [resolvable:$true] %s129
      %132 = dma.vmem_to_hbm [thread:$0]  %s128, 128, %s130, [#allocation9]
    $region29: #{tpu_custom_call.1} parent=1 // pred_fallthru
      _
    // Predicated region
    $region30: #{tpu_custom_call.1} parent=1 // pred_check
      _
    $region31: #{tpu_custom_call.1} parent=1 // pred_check_branch
      %134 = sbr.rel (0) target = $region33
    $region32: #{tpu_custom_call.1} parent=1 // pred_region
      %136 = dma.done [#allocation4], 128
    $region33: #{tpu_custom_call.1} parent=1 // pred_fallthru
      _
    // Predicated region
    $region34: #{tpu_custom_call.1} parent=1 // pred_check
      _
    $region35: #{tpu_custom_call.1} parent=1 // pred_check_branch
      %138 = sbr.rel (0) target = $region37
    $region36: #{tpu_custom_call.1} parent=1 // pred_region
      %140 = dma.done [#allocation9], 128
    $region37: #{tpu_custom_call.1} parent=1 // pred_fallthru
      _
    %141 = vsyncpa [#allocation3], 1
    %142 = vsyncpa [#allocation6], 1
    %143 = vsyncpa [#allocation4], 1
    %144 = vsyncpa [#allocation9], 1

</llo_original>
